<compile_context>
chip_gen: v7x
topology: tpu7x:2x2x1
jax: 0.10.0
libtpu: 0.0.40
codegen_flags: <defaults>
</compile_context>

<pallas_src>
import functools

import jax
import jax.numpy as jnp
from jax.experimental import pallas as pl
from jax.experimental.pallas import tpu as pltpu


def _round_up(x, m):
    return (x + m - 1) // m * m


def _center_loss_kernel(lab_ref, f2_ref, f_ref, c_ref, c2_ref,
                        part_ref, sum_ref, cnt_ref, *, multi_label, tc):
    j = pl.program_id(1)
    nc = pl.num_programs(1)

    # --- init per-B-tile accumulators (P3) ---
    @pl.when(j == 0)
    def _init():
        sum_ref[...] = jnp.zeros_like(sum_ref)
        cnt_ref[...] = jnp.zeros_like(cnt_ref)

    # distmat tile = ||f||^2 + ||c||^2 - 2 <f, c>  (MXU in native dtype, f32 acc)
    fc = jax.lax.dot_general(
        f_ref[...], c_ref[...], (((1,), (1,)), ((), ())),
        preferred_element_type=jnp.float32)                 # (tb, tc) f32
    dist = f2_ref[...] + c2_ref[...] - 2.0 * fc             # (tb,1)+(1,tc) bcast

    if multi_label:
        w = lab_ref[...]                                    # (tb, tc) f32
        m = (w > 0.0).astype(jnp.float32)
        v = dist * w
    else:
        lab = lab_ref[...]                                  # (tb, 1) f32
        col = (j * tc
               + jax.lax.broadcasted_iota(jnp.int32, dist.shape, 1)
               ).astype(jnp.float32)
        m = (lab == col).astype(jnp.float32)                # one-hot mask
        v = dist * lab

    v = jnp.clip(v, 1e-12, 1.0e12)

    # per-lane partial accumulation (cheap sublane reduce each step)
    sum_ref[...] += jnp.sum(v * m, axis=0, keepdims=True)   # (1, tc)
    cnt_ref[...] += jnp.sum(m, axis=0, keepdims=True)       # (1, tc)

    # --- finalize: write lane-dense partial (sum, count) for this B tile ---
    @pl.when(j == nc - 1)
    def _finalize():
        total = jnp.sum(sum_ref[...])
        count = jnp.sum(cnt_ref[...])
        lane = jax.lax.broadcasted_iota(jnp.int32, part_ref.shape, 2)
        part_ref[...] = jnp.where(
            lane == 0, total,
            jnp.where(lane == 1, count, 0.0)).astype(part_ref.dtype)


def center_loss(feature, labels, centers, *, tb_max=256, tc_max=512):
    """Matches CenterLoss_multclass.forward.

    feature: (B, D) float (bf16 recommended for perf)
    labels:  (B, C) float weights (multi-label branch) OR (B,) class indices
    centers: (C, D) float parameter (same dtype as feature)
    """
    B, D = feature.shape
    C = centers.shape[0]
    labels = jnp.asarray(labels)
    multi_label = labels.ndim > 1 and labels.size > B

    # Tile sizes: lane-dense C tiles (multiple of 128), sublane-aligned B tiles.
    tb = min(tb_max, _round_up(B, 8))
    tc = min(tc_max, _round_up(C, 128))
    B_pad = _round_up(B, tb)
    C_pad = _round_up(C, tc)
    D_pad = _round_up(D, 128)
    nb = B_pad // tb
    nc = C_pad // tc

    # Zero-pad compute arrays (padded rows/cols are masked out via labels).
    f = jnp.pad(feature, ((0, B_pad - B), (0, D_pad - D)))
    c = jnp.pad(centers, ((0, C_pad - C), (0, D_pad - D)))

    # Hoisted squared norms, kept in f32.
    f2 = jnp.sum(jnp.square(f.astype(jnp.float32)), axis=1, keepdims=True)  # (B_pad, 1)
    c2 = jnp.sum(jnp.square(c.astype(jnp.float32)), axis=1)[None, :]        # (1, C_pad)

    if multi_label:
        lab = jnp.pad(labels.astype(jnp.float32),
                      ((0, B_pad - B), (0, C_pad - C)))                     # (B_pad, C_pad)
        lab_spec = pl.BlockSpec((tb, tc), lambda i, j: (i, j))
    else:
        lab = jnp.pad(labels.reshape(B).astype(jnp.float32),
                      (0, B_pad - B), constant_values=-1.0)[:, None]        # (B_pad, 1)
        lab_spec = pl.BlockSpec((tb, 1), lambda i, j: (i, 0))

    kernel = functools.partial(_center_loss_kernel,
                               multi_label=multi_label, tc=tc)

    flops = int(2 * B_pad * C_pad * D_pad + 6 * B_pad * C_pad)
    bytes_accessed = int(
        f.size * f.dtype.itemsize               # feature streamed once (B outer)
        + c.size * c.dtype.itemsize * nb        # centers re-streamed per B tile
        + c2.size * 4 * nb
        + f2.size * 4
        + lab.size * 4
        + nb * 128 * 4)                         # partials output

    partials = pl.pallas_call(
        kernel,
        out_shape=jax.ShapeDtypeStruct((nb, 1, 128), jnp.float32),
        grid_spec=pltpu.PrefetchScalarGridSpec(
            num_scalar_prefetch=0,
            grid=(nb, nc),
            in_specs=[
                lab_spec,                                            # labels
                pl.BlockSpec((tb, 1), lambda i, j: (i, 0)),          # f2
                pl.BlockSpec((tb, D_pad), lambda i, j: (i, 0)),      # feature
                pl.BlockSpec((tc, D_pad), lambda i, j: (j, 0)),      # centers
                pl.BlockSpec((1, tc), lambda i, j: (0, j)),          # c2
            ],
            out_specs=pl.BlockSpec((1, 1, 128), lambda i, j: (i, 0, 0)),
            scratch_shapes=[pltpu.VMEM((1, tc), jnp.float32),        # running sum
                            pltpu.VMEM((1, tc), jnp.float32)],       # running count
        ),
        compiler_params=pltpu.CompilerParams(
            dimension_semantics=("parallel", "arbitrary"),
            # 48 MiB: well above what the (tb<=256, tc<=512) tiles need with
            # double buffering, and below v7x's 64 MiB physical VMEM.
            vmem_limit_bytes=48 * 1024 * 1024),
        cost_estimate=pl.CostEstimate(
            flops=flops, transcendentals=0, bytes_accessed=bytes_accessed),
    )(lab, f2, f, c, c2)

    total = jnp.sum(partials[:, 0, 0])
    count = jnp.sum(partials[:, 0, 1])
    return total / count


def center_loss_ref(feature, labels, centers):
    """Pure-JAX reference mirroring the PyTorch forward (same dtypes as kernel)."""
    B = feature.shape[0]
    C = centers.shape[0]
    fc = jax.lax.dot_general(feature, centers, (((1,), (1,)), ((), ())),
                             preferred_element_type=jnp.float32)
    distmat = (jnp.sum(jnp.square(feature.astype(jnp.float32)), 1, keepdims=True)
               + jnp.sum(jnp.square(centers.astype(jnp.float32)), 1)[None, :]
               - 2.0 * fc)
    if labels.ndim > 1 and labels.size > B:
        w = labels.astype(jnp.float32)
        mask = w > 0
    else:
        lab = labels.reshape(B).astype(jnp.float32)
        classes = jnp.arange(C, dtype=jnp.float32)
        mask = lab[:, None] == classes[None, :]
        w = jnp.broadcast_to(lab[:, None], (B, C))
    v = jnp.clip(distmat * w, 1e-12, 1.0e12)
    return jnp.sum(jnp.where(mask, v, 0.0)) / jnp.sum(mask)


if __name__ == "__main__":
    num_classes, feat_dim, batch = 16, 32, 8
    key = jax.random.PRNGKey(0)
    k1, k2, k3, k4 = jax.random.split(key, 4)

    centers_f32 = jax.random.normal(k1, (num_classes, feat_dim), jnp.float32)
    feature_f32 = jax.random.normal(k2, (batch, feat_dim), jnp.float32)
    # perf-preferred bf16 operands for the MXU (f32 accumulation inside).
    centers_bf = centers_f32.astype(jnp.bfloat16)
    feature_bf = feature_f32.astype(jnp.bfloat16)

    # --- multi-label branch: labels (B, C), weights > 0 where active ---
    raw = jax.random.uniform(k3, (batch, num_classes), jnp.float32)
    labels_mc = jnp.where(raw > 0.6, raw, 0.0)
    labels_mc = labels_mc.at[:, 0].set(jnp.maximum(labels_mc[:, 0], 0.5))  # >=1 active/row

    loss_mc = jax.block_until_ready(center_loss(feature_bf, labels_mc, centers_bf))
    ref_mc = center_loss_ref(feature_bf, labels_mc, centers_bf)
    assert jnp.allclose(loss_mc, ref_mc, rtol=1e-4, atol=1e-5), (loss_mc, ref_mc)

    # --- single-label branch: labels (B,) class indices (as floats, like torch) ---
    labels_sl = jax.random.randint(k4, (batch,), 0, num_classes).astype(jnp.float32)
    loss_sl = jax.block_until_ready(center_loss(feature_bf, labels_sl, centers_bf))
    ref_sl = center_loss_ref(feature_bf, labels_sl, centers_bf)
    assert jnp.allclose(loss_sl, ref_sl, rtol=1e-4, atol=1e-5), (loss_sl, ref_sl)

    # --- f32 path also runs (loose tolerance: matmul pass-count may differ) ---
    loss_f32 = jax.block_until_ready(center_loss(feature_f32, labels_mc, centers_f32))
    ref_f32 = center_loss_ref(feature_f32, labels_mc, centers_f32)
    assert jnp.allclose(loss_f32, ref_f32, rtol=2e-2, atol=1e-3), (loss_f32, ref_f32)

    print("KERNEL_OK")
</pallas_src>

<mosaic_0001>
module attributes {stable_mosaic.version = 11 : i64} {
  func.func @_center_loss_kernel(%arg0: i32, %arg1: i32, %arg2: memref<8x128xf32, #tpu.memory_space<vmem>>, %arg3: memref<8x1xf32, #tpu.memory_space<vmem>>, %arg4: memref<8x128xbf16, #tpu.memory_space<vmem>>, %arg5: memref<128x128xbf16, #tpu.memory_space<vmem>>, %arg6: memref<1x128xf32, #tpu.memory_space<vmem>>, %arg7: memref<1x1x128xf32, #tpu.memory_space<vmem>>, %arg8: memref<1x128xf32, #tpu.memory_space<vmem>>, %arg9: memref<1x128xf32, #tpu.memory_space<vmem>>) attributes {dimension_semantics = [#tpu.dimension_semantics<parallel>, #tpu.dimension_semantics<arbitrary>], iteration_bounds = array<i64: 1, 1>, scalar_prefetch = 0 : i64, scratch_operands = 2 : i64, tpu.core_type = #tpu.core_type<tc>, window_params = [{transform_indices = @transform_0, window_bounds = array<i64: 8, 128>}, {transform_indices = @transform_1, window_bounds = array<i64: 8, 1>}, {transform_indices = @transform_2, window_bounds = array<i64: 8, 128>}, {transform_indices = @transform_3, window_bounds = array<i64: 128, 128>}, {transform_indices = @transform_4, window_bounds = array<i64: 1, 128>}, {transform_indices = @transform_5, window_bounds = array<i64: 1, 1, 128>}]} {
    %c0_i32 = arith.constant 0 : i32
    %0 = arith.cmpi eq, %arg1, %c0_i32 : i32
    %1 = arith.extui %0 : i1 to i32
    %c0_i32_0 = arith.constant 0 : i32
    %2 = arith.cmpi ne, %1, %c0_i32_0 : i32
    scf.if %2 {
      %cst_26 = arith.constant 0.000000e+00 : f32
      %38 = vector.broadcast %cst_26 : f32 to vector<1x128xf32>
      %c0_27 = arith.constant 0 : index
      %c0_28 = arith.constant 0 : index
      %39 = vector.load %arg8[%c0_27, %c0_28] : memref<1x128xf32, #tpu.memory_space<vmem>>, vector<1x128xf32>
      tpu.vector_store %arg8[%c0_27, %c0_28], %38 {strides = array<i32>} : memref<1x128xf32, #tpu.memory_space<vmem>>, vector<1x128xf32>,
      %cst_29 = arith.constant 0.000000e+00 : f32
      %40 = vector.broadcast %cst_29 : f32 to vector<1x128xf32>
      %c0_30 = arith.constant 0 : index
      %c0_31 = arith.constant 0 : index
      %41 = vector.load %arg9[%c0_30, %c0_31] : memref<1x128xf32, #tpu.memory_space<vmem>>, vector<1x128xf32>
      tpu.vector_store %arg9[%c0_30, %c0_31], %40 {strides = array<i32>} : memref<1x128xf32, #tpu.memory_space<vmem>>, vector<1x128xf32>,
    } else {
    }
    %c0 = arith.constant 0 : index
    %c0_1 = arith.constant 0 : index
    %3 = vector.load %arg4[%c0, %c0_1] : memref<8x128xbf16, #tpu.memory_space<vmem>>, vector<8x128xbf16>
    %c0_2 = arith.constant 0 : index
    %c0_3 = arith.constant 0 : index
    %4 = vector.load %arg5[%c0_2, %c0_3] : memref<128x128xbf16, #tpu.memory_space<vmem>>, vector<128x128xbf16>
    %cst = arith.constant dense<0.000000e+00> : vector<8x128xf32>
    %5 = tpu.matmul %3, %4, %cst {dimension_numbers = #tpu.dot_dimension_numbers<[1], [1], [0], [0], [0, 0, 1, 0], [], []>} : vector<8x128xbf16>, vector<128x128xbf16>, vector<8x128xf32> -> vector<8x128xf32>
    %c0_4 = arith.constant 0 : index
    %c0_5 = arith.constant 0 : index
    %6 = vector.load %arg3[%c0_4, %c0_5] : memref<8x1xf32, #tpu.memory_space<vmem>>, vector<8x1xf32>
    %c0_6 = arith.constant 0 : index
    %c0_7 = arith.constant 0 : index
    %7 = vector.load %arg6[%c0_6, %c0_7] : memref<1x128xf32, #tpu.memory_space<vmem>>, vector<1x128xf32>
    %8 = vector.broadcast %6 : vector<8x1xf32> to vector<8x128xf32>
    %9 = vector.broadcast %7 : vector<1x128xf32> to vector<8x128xf32>
    %10 = arith.addf %8, %9 : vector<8x128xf32>
    %cst_8 = arith.constant 2.000000e+00 : f32
    %11 = vector.broadcast %cst_8 : f32 to vector<8x128xf32>
    %12 = arith.mulf %11, %5 : vector<8x128xf32>
    %13 = arith.subf %10, %12 : vector<8x128xf32>
    %c0_9 = arith.constant 0 : index
    %c0_10 = arith.constant 0 : index
    %14 = vector.load %arg2[%c0_9, %c0_10] : memref<8x128xf32, #tpu.memory_space<vmem>>, vector<8x128xf32>
    %cst_11 = arith.constant 0.000000e+00 : f32
    %15 = vector.broadcast %cst_11 : f32 to vector<8x128xf32>
    %16 = arith.cmpf ogt, %14, %15 : vector<8x128xf32>
    %17 = arith.extui %16 : vector<8x128xi1> to vector<8x128xi32>
    %18 = arith.sitofp %17 : vector<8x128xi32> to vector<8x128xf32>
    %19 = arith.mulf %13, %14 : vector<8x128xf32>
    %cst_12 = arith.constant 9.99999996E-13 : f32
    %cst_13 = arith.constant 9.99999995E+11 : f32
    %20 = vector.broadcast %cst_12 : f32 to vector<8x128xf32>
    %21 = arith.maximumf %20, %19 : vector<8x128xf32>
    %22 = vector.broadcast %cst_13 : f32 to vector<8x128xf32>
    %23 = arith.minimumf %22, %21 : vector<8x128xf32>
    %c0_14 = arith.constant 0 : index
    %c0_15 = arith.constant 0 : index
    %24 = vector.load %arg8[%c0_14, %c0_15] : memref<1x128xf32, #tpu.memory_space<vmem>>, vector<1x128xf32>
    %25 = arith.mulf %23, %18 : vector<8x128xf32>
    %cst_16 = arith.constant dense<0.000000e+00> : vector<128xf32>
    %26 = vector.multi_reduction <add>, %25, %cst_16 [0] : vector<8x128xf32> to vector<128xf32>
    %27 = vector.shape_cast %26 : vector<128xf32> to vector<1x128xf32>
    %28 = arith.addf %24, %27 : vector<1x128xf32>
    %c0_17 = arith.constant 0 : index
    %c0_18 = arith.constant 0 : index
    %29 = vector.load %arg8[%c0_17, %c0_18] : memref<1x128xf32, #tpu.memory_space<vmem>>, vector<1x128xf32>
    tpu.vector_store %arg8[%c0_17, %c0_18], %28 {strides = array<i32>} : memref<1x128xf32, #tpu.memory_space<vmem>>, vector<1x128xf32>,
    %c0_19 = arith.constant 0 : index
    %c0_20 = arith.constant 0 : index
    %30 = vector.load %arg9[%c0_19, %c0_20] : memref<1x128xf32, #tpu.memory_space<vmem>>, vector<1x128xf32>
    %cst_21 = arith.constant dense<0.000000e+00> : vector<128xf32>
    %31 = vector.multi_reduction <add>, %18, %cst_21 [0] : vector<8x128xf32> to vector<128xf32>
    %32 = vector.shape_cast %31 : vector<128xf32> to vector<1x128xf32>
    %33 = arith.addf %30, %32 : vector<1x128xf32>
    %c0_22 = arith.constant 0 : index
    %c0_23 = arith.constant 0 : index
    %34 = vector.load %arg9[%c0_22, %c0_23] : memref<1x128xf32, #tpu.memory_space<vmem>>, vector<1x128xf32>
    tpu.vector_store %arg9[%c0_22, %c0_23], %33 {strides = array<i32>} : memref<1x128xf32, #tpu.memory_space<vmem>>, vector<1x128xf32>,
    %c0_i32_24 = arith.constant 0 : i32
    %35 = arith.cmpi eq, %arg1, %c0_i32_24 : i32
    %36 = arith.extui %35 : i1 to i32
    %c0_i32_25 = arith.constant 0 : i32
    %37 = arith.cmpi ne, %36, %c0_i32_25 : i32
    scf.if %37 {
      %c0_26 = arith.constant 0 : index
      %c0_27 = arith.constant 0 : index
      %38 = vector.load %arg8[%c0_26, %c0_27] : memref<1x128xf32, #tpu.memory_space<vmem>>, vector<1x128xf32>
      %39 = vector.shape_cast %38 : vector<1x128xf32> to vector<1x1x128xf32>
      %cst_28 = arith.constant dense<0.000000e+00> : vector<1xf32>
      %40 = vector.multi_reduction <add>, %39, %cst_28 [1, 2] : vector<1x1x128xf32> to vector<1xf32>
      %41 = vector.shape_cast %40 : vector<1xf32> to vector<1x1x1xf32>
      %42 = vector.extract %41[0, 0, 0] : f32 from vector<1x1x1xf32>
      %c0_29 = arith.constant 0 : index
      %c0_30 = arith.constant 0 : index
      %43 = vector.load %arg9[%c0_29, %c0_30] : memref<1x128xf32, #tpu.memory_space<vmem>>, vector<1x128xf32>
      %44 = vector.shape_cast %43 : vector<1x128xf32> to vector<1x1x128xf32>
      %cst_31 = arith.constant dense<0.000000e+00> : vector<1xf32>
      %45 = vector.multi_reduction <add>, %44, %cst_31 [1, 2] : vector<1x1x128xf32> to vector<1xf32>
      %46 = vector.shape_cast %45 : vector<1xf32> to vector<1x1x1xf32>
      %47 = vector.extract %46[0, 0, 0] : f32 from vector<1x1x1xf32>
      %48 = tpu.iota {dimensions = array<i32: 2>} : vector<1x1x128xi32>
      %c0_i32_32 = arith.constant 0 : i32
      %49 = vector.broadcast %c0_i32_32 : i32 to vector<1x1x128xi32>
      %50 = arith.cmpi eq, %48, %49 : vector<1x1x128xi32>
      %c1_i32 = arith.constant 1 : i32
      %51 = vector.broadcast %c1_i32 : i32 to vector<1x1x128xi32>
      %52 = arith.cmpi eq, %48, %51 : vector<1x1x128xi32>
      %cst_33 = arith.constant 0.000000e+00 : f32
      %53 = vector.broadcast %47 : f32 to vector<1x1x128xf32>
      %54 = vector.broadcast %cst_33 : f32 to vector<1x1x128xf32>
      %55 = arith.select %52, %53, %54 : vector<1x1x128xi1>, vector<1x1x128xf32>
      %56 = vector.broadcast %42 : f32 to vector<1x1x128xf32>
      %57 = arith.select %50, %56, %55 : vector<1x1x128xi1>, vector<1x1x128xf32>
      %c0_34 = arith.constant 0 : index
      %c0_35 = arith.constant 0 : index
      %c0_36 = arith.constant 0 : index
      %58 = vector.load %arg7[%c0_34, %c0_35, %c0_36] : memref<1x1x128xf32, #tpu.memory_space<vmem>>, vector<1x1x128xf32>
      tpu.vector_store %arg7[%c0_34, %c0_35, %c0_36], %57 {strides = array<i32>} : memref<1x1x128xf32, #tpu.memory_space<vmem>>, vector<1x1x128xf32>,
    } else {
    }
    return
  }
  func.func @transform_0(%arg0: i32, %arg1: i32) -> (i32, i32) {
    %c0_i32 = arith.constant 0 : i32
    return %arg0, %arg1 : i32, i32
  }
  func.func @transform_1(%arg0: i32, %arg1: i32) -> (i32, i32) {
    %c0_i32 = arith.constant 0 : i32
    %c0_i32_0 = arith.constant 0 : i32
    return %arg0, %c0_i32 : i32, i32
  }
  func.func @transform_2(%arg0: i32, %arg1: i32) -> (i32, i32) {
    %c0_i32 = arith.constant 0 : i32
    %c0_i32_0 = arith.constant 0 : i32
    return %arg0, %c0_i32 : i32, i32
  }
  func.func @transform_3(%arg0: i32, %arg1: i32) -> (i32, i32) {
    %c0_i32 = arith.constant 0 : i32
    %c0_i32_0 = arith.constant 0 : i32
    return %arg1, %c0_i32 : i32, i32
  }
  func.func @transform_4(%arg0: i32, %arg1: i32) -> (i32, i32) {
    %c0_i32 = arith.constant 0 : i32
    %c0_i32_0 = arith.constant 0 : i32
    return %c0_i32, %arg1 : i32, i32
  }
  func.func @transform_5(%arg0: i32, %arg1: i32) -> (i32, i32, i32) {
    %c0_i32 = arith.constant 0 : i32
    %c0_i32_0 = arith.constant 0 : i32
    %c0_i32_1 = arith.constant 0 : i32
    return %arg0, %c0_i32, %c0_i32_0 : i32, i32, i32
  }
}

</mosaic_0001>

<llo_original>
// kernel: tpu_custom_call.1
$region0: #{tpu_custom_call.1}
  #allocation0 [shape = 'u32[]', space=smem, size = 0x4, offset = 0x4, fixed_abs, tag = 'smem constant byte address 0x4 - core index']
  #allocation1 [shape = 'u32[144,128]{1,0:T(1,128)}', space=vmem, size = 0x12000, scoped, tag = 'internal scratch']
  #allocation2 [shape = 'f32[1,128]{1,0:T(1,128)}', space=vmem, size = 0x200, scoped, tag = 'scratch operand']
  #allocation3 [shape = 'f32[1,128]{1,0:T(1,128)}', space=vmem, size = 0x200, scoped, tag = 'scratch operand']
  %s0 = inlined_call_operand.vmem [shape: f32[8,128], index: 0, kind: input, shape index: {}]
  %s1 = inlined_call_operand.vmem [shape: f32[8,1], index: 1, kind: input, shape index: {}]
  %s2 = inlined_call_operand.vmem [shape: bf16[8,128], index: 2, kind: input, shape index: {}]
  %s3 = inlined_call_operand.hbm [shape: bf16[128,128], index: 3, kind: input, shape index: {}]
  %s4 = inlined_call_operand.vmem [shape: f32[1,128], index: 4, kind: input, shape index: {}]
  %s5 = inlined_call_operand.hbm [shape: f32[1,1,128], index: 5, kind: output, shape index: {}]
  %s6 = sld [smem:[#allocation0]]
  $region42: #{tpu_custom_call.1} parent=0
    _
  %s8 = ssub.s32 1, %s6
  %s9 = scalar_select 0, %s8, %s6
  $region1: #{tpu_custom_call.1} parent=0
    #allocation4 [shape = 'u8[32768]{0}', space=vmem, size = 0x8000, scoped, tag = 'input window, operand 3, single buffered']
    #allocation5 [shape = 's32[1]{0}', space=sflag, size = 0x4, scoped, tag = 'scoped memory for tpu_custom_call.1']
    #allocation6 [shape = 's32[1]{0}', space=sflag, size = 0x4, scoped, tag = 'scoped memory for tpu_custom_call.1']
    #allocation7 [shape = 'u8[512]{0}', space=vmem, size = 0x400, scoped, tag = 'output window, operand 0, single buffered']
    %10 = vsyncpa [#allocation5], 0
    %11 = vsyncpa [#allocation6], 0
    // Predicated region
    $region2: #{tpu_custom_call.1} parent=1 // pred_check
      _
    $region3: #{tpu_custom_call.1} parent=1 // pred_check_branch
      %13 = sbr.rel (0) target = $region5
    $region4: #{tpu_custom_call.1} parent=1 // pred_region
      _
    $region5: #{tpu_custom_call.1} parent=1 // pred_fallthru
      _
    // Predicated region
    $region6: #{tpu_custom_call.1} parent=1 // pred_check
      _
    $region7: #{tpu_custom_call.1} parent=1 // pred_check_branch
      %15 = sbr.rel (0) target = $region9
    $region8: #{tpu_custom_call.1} parent=1 // pred_region
      _
    $region9: #{tpu_custom_call.1} parent=1 // pred_fallthru
      _
    // Predicated region
    $region10: #{tpu_custom_call.1} parent=1 // pred_check
      _
    $region11: #{tpu_custom_call.1} parent=1 // pred_check_branch
      %17 = sbr.rel (0) target = $region13
    $region12: #{tpu_custom_call.1} parent=1 // pred_region
      _
    $region13: #{tpu_custom_call.1} parent=1 // pred_fallthru
      _
    // Predicated region
    $region14: #{tpu_custom_call.1} parent=1 // pred_check
      _
    $region15: #{tpu_custom_call.1} parent=1 // pred_check_branch
      %19 = sbr.rel (0) target = $region17
    $region16: #{tpu_custom_call.1} parent=1 // pred_region
      %s21 = ssub.s32 1024, 1024
      %22 = vsyncadd [#allocation5], %s21
      %s23 = sshll.u32 [#allocation4], 4
      %s24 = int_to_ptr.vmem [resolvable:$true] %s23
      %29 = dma.hbm_to_vmem [thread:$0]  %s3, 1024, %s24, [#allocation5], 64, 64, 4
    $region17: #{tpu_custom_call.1} parent=1 // pred_fallthru
      _
    // Predicated region
    $region18: #{tpu_custom_call.1} parent=1 // pred_check
      _
    $region19: #{tpu_custom_call.1} parent=1 // pred_check_branch
      %31 = sbr.rel (0) target = $region21
    $region20: #{tpu_custom_call.1} parent=1 // pred_region
      _
    $region21: #{tpu_custom_call.1} parent=1 // pred_fallthru
      _
    // Predicated region
    $region22: #{tpu_custom_call.1} parent=1 // pred_check
      _
    $region23: #{tpu_custom_call.1} parent=1 // pred_check_branch
      %33 = sbr.rel (0) target = $region25
    $region24: #{tpu_custom_call.1} parent=1 // pred_region
      %34 = dma.done [#allocation5], 1024
    $region25: #{tpu_custom_call.1} parent=1 // pred_fallthru
      _
    %p36 = scmp.eq.s32.totalorder 0, 0
    // Predicated region
    $region26: #{tpu_custom_call.1} parent=1 // pred_check
      %p37 = pneg %p36
    $region27: #{tpu_custom_call.1} parent=1 // pred_check_branch
      %39 = sbr.rel (%p37) target = $region29
    $region28: #{tpu_custom_call.1} parent=1 // pred_region
      %40 = vst [vmem:[#allocation2] sm:$0x1] 0.0
      %41 = vst [vmem:[#allocation3] sm:$0x1] 0.0
    $region29: #{tpu_custom_call.1} parent=1 // pred_fallthru
      _
    %v42 = vld [vmem:[%s2] sm:$0xf]
    %v43 = vld [vmem:[#allocation4] sm:$0xf]
    %v44 = vld [vmem:[#allocation4 + $0x4] sm:$0xf]
    %v45 = vld [vmem:[#allocation4 + $0x8] sm:$0xf]
    %v46 = vld [vmem:[#allocation4 + $0xc] sm:$0xf]
    %v47 = vld [vmem:[#allocation4 + $0x10] sm:$0xf]
    %v48 = vld [vmem:[#allocation4 + $0x14] sm:$0xf]
    %v49 = vld [vmem:[#allocation4 + $0x18] sm:$0xf]
    %v50 = vld [vmem:[#allocation4 + $0x1c] sm:$0xf]
    %v51 = vld [vmem:[#allocation4 + $0x20] sm:$0xf]
    %v52 = vld [vmem:[#allocation4 + $0x24] sm:$0xf]
    %v53 = vld [vmem:[#allocation4 + $0x28] sm:$0xf]
    %v54 = vld [vmem:[#allocation4 + $0x2c] sm:$0xf]
    %v55 = vld [vmem:[#allocation4 + $0x30] sm:$0xf]
    %v56 = vld [vmem:[#allocation4 + $0x34] sm:$0xf]
    %v57 = vld [vmem:[#allocation4 + $0x38] sm:$0xf]
    %v58 = vld [vmem:[#allocation4 + $0x3c] sm:$0xf]
    %v75 = vunpack.c.l.b16 %v43
    %v76 = vunpack.c.l.b16 %v44
    %v77 = vunpack.c.l.b16 %v45
    %v78 = vunpack.c.l.b16 %v46
    %v79 = vunpack.c.l.b16 %v47
    %v80 = vunpack.c.l.b16 %v48
    %v81 = vunpack.c.l.b16 %v49
    %v82 = vunpack.c.l.b16 %v50
    %v83 = vunpack.c.l.b16 %v51
    %v84 = vunpack.c.l.b16 %v52
    %v85 = vunpack.c.l.b16 %v53
    %v86 = vunpack.c.l.b16 %v54
    %v87 = vunpack.c.l.b16 %v55
    %v88 = vunpack.c.l.b16 %v56
    %v89 = vunpack.c.l.b16 %v57
    %v90 = vunpack.c.l.b16 %v58
    %v91 = vpack.c.b16 %v76, %v75
    %v92 = vpack.c.b16 %v78, %v77
    %v93 = vpack.c.b16 %v80, %v79
    %v94 = vpack.c.b16 %v82, %v81
    %v95 = vpack.c.b16 %v84, %v83
    %v96 = vpack.c.b16 %v86, %v85
    %v97 = vpack.c.b16 %v88, %v87
    %v98 = vpack.c.b16 %v90, %v89
    %107 = vmatprep.subr.bf16.mxu0 0
    %108 = vmatpush1.bf16.xpose.msra.mxu0 %v91
    %109 = vmatprep.subr.bf16.mxu0 0
    %110 = vmatpush1.bf16.xpose.msra.mxu0 %v92
    %111 = vmatprep.subr.bf16.mxu0 0
    %112 = vmatpush1.bf16.xpose.msra.mxu0 %v93
    %113 = vmatprep.subr.bf16.mxu0 0
    %114 = vmatpush1.bf16.xpose.msra.mxu0 %v94
    %115 = vmatprep.subr.bf16.mxu0 0
    %116 = vmatpush1.bf16.xpose.msra.mxu0 %v95
    %117 = vmatprep.subr.bf16.mxu0 0
    %118 = vmatpush1.bf16.xpose.msra.mxu0 %v96
    %119 = vmatprep.subr.bf16.mxu0 0
    %120 = vmatpush1.bf16.xpose.msra.mxu0 %v97
    %121 = vmatprep.subr.bf16.mxu0 0
    %122 = vmatpush1.bf16.xpose.msra.mxu0 %v98
    %123 = vmatprep.subr.bf16.mxu0 0
    %124 = vmatpush1.bf16.xpose.msra.mxu0 0
    %125 = vmatprep.subr.bf16.mxu0 0
    %126 = vmatpush1.bf16.xpose.msra.mxu0 0
    %127 = vmatprep.subr.bf16.mxu0 0
    %128 = vmatpush1.bf16.xpose.msra.mxu0 0
    %129 = vmatprep.subr.bf16.mxu0 0
    %130 = vmatpush1.bf16.xpose.msra.mxu0 0
    %131 = vmatprep.subr.bf16.mxu0 0
    %132 = vmatpush1.bf16.xpose.msra.mxu0 0
    %133 = vmatprep.subr.bf16.mxu0 0
    %134 = vmatpush1.bf16.xpose.msra.mxu0 0
    %135 = vmatprep.subr.bf16.mxu0 0
    %136 = vmatpush1.bf16.xpose.msra.mxu0 0
    %137 = vmatprep.subr.bf16.mxu0 0
    %138 = vmatpush1.bf16.xpose.msra.mxu0 0
    %139 = vmatprep.mubr.bf16.mxu0 0
    %140 = vmatmul.mubr.bf16.gmra.mrb[0].mxu0 %v42
    %v141 = vpop.f32.mrb[0].mxu0
    %v142 = vadd.f32 0.0, %v141
    %v143 = vpop.f32.mrb[0].mxu0
    %v144 = vpop.f32.mrb[0].mxu0
    %v145 = vpop.f32.mrb[0].mxu0
    %146 = vdwg.mxu0
    %v147 = vld [vmem:[%s1] sm:$0xff]
    %v148 = vld [vmem:[%s4] sm:$0x1]
    %150 = vset.pattern.permute.xlu0 0
    %151 = vperm.xlu0 %150, %v147
    %v152 = vpop.permute.xlu0 %151
    %v155 = vlaneseq
    %v156 = vshrl.u32 %v155, 7
    %v157 = vsub.s32 0, %v156
    %v158 = vrot.slane %v148, %v157
    %v160 = vadd.f32 %v152, %v158
    %v161 = vmul.f32 %v142, 2.0
    %v162 = vsub.f32 %v160, %v161
    %v163 = vld [vmem:[%s0] sm:$0xff]
    %vm164 = vcmp.gt.f32.partialorder %v163, 0.0
    %v165 = vsel %vm164, 1, 0
    %v166 = vcvt.s32.f32 %v165
    %v167 = vmul.f32 %v162, %v163
    %v168 = vmax.f32 %v167, 1e-12
    %v169 = vmin.f32 %v168, 1e+12
    %v170 = vld [vmem:[#allocation2] sm:$0x1]
    %v171 = vmul.f32 %v169, %v166
    %v172 = vrot.slane %v171, 4
    %v173 = vadd.f32 %v171, %v172
    %v174 = vrot.slane %v173, 2
    %v175 = vadd.f32 %v173, %v174
    %v176 = vrot.slane %v175, 1
    %v177 = vadd.f32 %v175, %v176
    %v178 = vadd.f32 %v170, %v177
    %179 = vst [vmem:[#allocation2] sm:$0x1] %v178
    %v180 = vld [vmem:[#allocation3] sm:$0x1]
    %v181 = vrot.slane %v166, 4
    %v182 = vadd.f32 %v166, %v181
    %v183 = vrot.slane %v182, 2
    %v184 = vadd.f32 %v182, %v183
    %v185 = vrot.slane %v184, 1
    %v186 = vadd.f32 %v184, %v185
    %v187 = vadd.f32 %v180, %v186
    %188 = vst [vmem:[#allocation3] sm:$0x1] %v187
    // Predicated region
    $region30: #{tpu_custom_call.1} parent=1 // pred_check
      %p189 = pneg %p36
    $region31: #{tpu_custom_call.1} parent=1 // pred_check_branch
      %191 = sbr.rel (%p189) target = $region33
    $region32: #{tpu_custom_call.1} parent=1 // pred_region
      %v192 = vld [vmem:[#allocation2] sm:$0x1]
      %vm193 = vcmask 1040384
      %v194 = vsel %vm193, %v192, 0.0
      %195 = vadd.xlane.f32.xlu0 %v194
      %v196 = vpop.xlane.xlu0 %195
      %v197 = vrot.slane %v196, 4
      %v198 = vadd.f32 %v196, %v197
      %v199 = vrot.slane %v198, 2
      %v200 = vadd.f32 %v198, %v199
      %v201 = vrot.slane %v200, 1
      %v202 = vadd.f32 %v200, %v201
      %s203 = vtos %v202
      %v204 = vld [vmem:[#allocation3] sm:$0x1]
      %v205 = vsel %vm193, %v204, 0.0
      %206 = vadd.xlane.f32.xlu0 %v205
      %v207 = vpop.xlane.xlu0 %206
      %v208 = vrot.slane %v207, 4
      %v209 = vadd.f32 %v207, %v208
      %v210 = vrot.slane %v209, 2
      %v211 = vadd.f32 %v209, %v210
      %v212 = vrot.slane %v211, 1
      %v213 = vadd.f32 %v211, %v212
      %s214 = vtos %v213
      %v215 = vlaneseq
      %v216 = vand.u32 %v215, 127
      %vm217 = vcmp.eq.s32.totalorder %v216, 0
      %vm218 = vcmp.eq.s32.totalorder %v216, 1
      %v219 = vstv %s214
      %v220 = vsel %vm218, %v219, 0.0
      %v221 = vstv %s203
      %v222 = vsel %vm217, %v221, %v220
      %223 = vst [vmem:[#allocation7] sm:$0x1] %v222
    $region33: #{tpu_custom_call.1} parent=1 // pred_fallthru
      _
    // Predicated region
    $region34: #{tpu_custom_call.1} parent=1 // pred_check
      _
    $region35: #{tpu_custom_call.1} parent=1 // pred_check_branch
      %225 = sbr.rel (0) target = $region37
    $region36: #{tpu_custom_call.1} parent=1 // pred_region
      %s227 = ssub.s32 16, 16
      %228 = vsyncadd [#allocation6], %s227
      %s230 = sshll.u32 [#allocation7], 4
      %s231 = int_to_ptr.vmem [resolvable:$true] %s230
      %233 = dma.vmem_to_hbm [thread:$0]  %s231, 16, %s5, [#allocation6]
    $region37: #{tpu_custom_call.1} parent=1 // pred_fallthru
      _
    // Predicated region
    $region38: #{tpu_custom_call.1} parent=1 // pred_check
      _
    $region39: #{tpu_custom_call.1} parent=1 // pred_check_branch
      %235 = sbr.rel (0) target = $region41
    $region40: #{tpu_custom_call.1} parent=1 // pred_region
      %236 = dma.done [#allocation6], 16
    $region41: #{tpu_custom_call.1} parent=1 // pred_fallthru
      _
    %237 = vsyncpa [#allocation5], 1
    %238 = vsyncpa [#allocation6], 1

</llo_original>
